<compile_context>
chip_gen: v7x
topology: tpu7x:2x2x1
jax: 0.10.0
libtpu: 0.0.40
codegen_flags: <defaults>
</compile_context>

<pallas_src>
import jax
import jax.numpy as jnp
from jax.experimental import pallas as pl
from jax.experimental.pallas import tpu as pltpu


# --------------------------------------------------------------------------- #
# Kernel
# --------------------------------------------------------------------------- #
def _make_decoder_kernel(act_dtype):
    """Builds the fused decoder kernel for a given activation dtype.

    Layout (batch on the LANE axis, features on sublanes):
      xT_ref : [dim, TB]  f32
      w*_ref : [out, in]        (torch Linear layout; w2..w4 stored bf16)
      b*_ref : [out, 1]   f32
      o_ref  : [k, TB]
    """

    def act(h_f32, b_ref):
        # f32 accumulate + bias, then tanh in act_dtype (bf16 on v6e/v7x halves
        # EUP work; f32 on v5e which has no bf16 EUP/VPU).
        return jnp.tanh((h_f32 + b_ref[...]).astype(act_dtype))

    def decoder_kernel(xT_ref, w1_ref, b1_ref, w2_ref, b2_ref,
                       w3_ref, b3_ref, w4_ref, b4_ref, o_ref):
        xT = xT_ref[...]                                   # [dim, TB] f32
        w1 = w1_ref[...]                                   # [128, dim] f32

        # Layer 1: K=dim (=2) contraction as VPU broadcast FMAs — a K=2 matmul
        # would leave the systolic array <2% utilized and burn the MXU slot.
        h = w1[:, 0:1] * xT[0:1, :]
        for j in range(1, w1.shape[1]):                    # unrolled at trace time
            h = h + w1[:, j:j + 1] * xT[j:j + 1, :]
        h = act(h, b1_ref)                                 # [128, TB] act_dtype

        # Layers 2-4: bf16 MXU operands, f32 accumulation.  The .astype(bf16)
        # is a no-op when act_dtype is already bf16 (v6e/v7x path).
        h = jnp.dot(w2_ref[...], h.astype(jnp.bfloat16),
                    preferred_element_type=jnp.float32)
        h = act(h, b2_ref)                                 # [64, TB]
        h = jnp.dot(w3_ref[...], h.astype(jnp.bfloat16),
                    preferred_element_type=jnp.float32)
        h = act(h, b3_ref)                                 # [32, TB]
        h = jnp.dot(w4_ref[...], h.astype(jnp.bfloat16),
                    preferred_element_type=jnp.float32)
        o_ref[...] = (h + b4_ref[...]).astype(o_ref.dtype)  # [k, TB]

    return decoder_kernel


# --------------------------------------------------------------------------- #
# Wrapper helpers
# --------------------------------------------------------------------------- #
def _round_up(n, m):
    return ((n + m - 1) // m) * m


def _resident_spec(shape):
    # `shape` is a call argument, so each lambda closes over its own value.
    return pl.BlockSpec(shape, lambda i: (0,) * len(shape))


def _device_kind():
    try:
        return jax.devices()[0].device_kind.lower()
    except Exception:
        return ""


def _default_act_dtype():
    # bf16 tanh/bias only where a bf16 EUP/VPU exists (v6e / v7x); f32 elsewhere.
    kind = _device_kind()
    if ("v6" in kind) or ("v7" in kind):
        return jnp.bfloat16
    return jnp.float32


def _num_tensorcores():
    # v7x has 2 TCs per chip; v5e/v6e have 1.
    return 2 if "v7" in _device_kind() else 1


# --------------------------------------------------------------------------- #
# Forward passes
# --------------------------------------------------------------------------- #
def decoder_forward_colmajor(xT, params, *, batch_tile=2048, act_dtype=None,
                             out_dtype=jnp.float32):
    """Transpose-free entry point.

    xT: [dim, B] f32 (batch already on the minor axis)  ->  [k, B] out_dtype.
    Prefer this when the producer/consumer can use the column-major layout: it
    avoids two full HBM passes (input + output transpose) vs decoder_forward.
    """
    d, B = xT.shape
    k = params["w4"].shape[0]
    if act_dtype is None:
        act_dtype = _default_act_dtype()

    # NOTE: for tiny batches (B <= ~128) the fixed pallas_call overhead
    # dominates the ~0.2 MFLOP of work; in production fuse this layer into its
    # caller instead of launching a dedicated kernel.
    num_cores = _num_tensorcores()
    if B >= num_cores * batch_tile:
        tb = batch_tile
    else:
        # Guarantee >= num_cores grid steps (v7x megacore) for moderate B.
        per_core = -(-B // num_cores)
        tb = min(_round_up(max(batch_tile, 128), 128),
                 _round_up(max(per_core, 1), 128))
    assert tb % 128 == 0
    bp = _round_up(B, tb)

    if bp != B:
        xT = jnp.pad(xT, ((0, 0), (0, bp - B)))            # pad batch (lanes) only

    args = (xT,
            params["w1"], params["b1"], params["w2"], params["b2"],
            params["w3"], params["b3"], params["w4"], params["b4"])

    in_specs = [pl.BlockSpec((d, tb), lambda i: (0, i))]          # x: per-step tile
    in_specs += [_resident_spec(a.shape) for a in args[1:]]       # weights: resident

    compiler_kwargs = dict(dimension_semantics=("parallel",))     # 2 TCs on v7x
    if tb > 4096:
        # v5e's default scoped VMEM is only 16 MiB; be explicit for huge tiles.
        need = tb * 1600 + 2 * (d + k) * tb * 4 + (1 << 20)
        compiler_kwargs["vmem_limit_bytes"] = int(min(need, 56 * 1024 * 1024))

    out_t = pl.pallas_call(
        _make_decoder_kernel(act_dtype),
        out_shape=jax.ShapeDtypeStruct((k, bp), out_dtype),
        grid=(bp // tb,),
        in_specs=in_specs,
        out_specs=pl.BlockSpec((k, tb), lambda i: (0, i)),
        compiler_params=pltpu.CompilerParams(**compiler_kwargs),
    )(*args)

    return out_t[:, :B] if bp != B else out_t               # [k, B]


def decoder_forward(x, params, **kwargs):
    """PyTorch-layout entry point: x [B, dim] f32 -> [B, k].

    Keeps the original module semantics; the two boundary transposes are extra
    HBM passes — use decoder_forward_colmajor when the caller can avoid them.
    """
    return decoder_forward_colmajor(x.T, params, **kwargs).T


# --------------------------------------------------------------------------- #
# Params + references
# --------------------------------------------------------------------------- #
def init_params(key, dim, k):
    """torch.nn.Linear-style shapes/init. Weights stored [out, in]; layers 2-4
    additionally cast to bf16 for the MXU. f32 masters kept for the reference."""
    ks = jax.random.split(key, 8)

    def linear(kw, kb, fan_in, fan_out):
        bound = 1.0 / float(fan_in) ** 0.5
        w = jax.random.uniform(kw, (fan_out, fan_in), jnp.float32, -bound, bound)
        b = jax.random.uniform(kb, (fan_out, 1), jnp.float32, -bound, bound)
        return w, b

    w1, b1 = linear(ks[0], ks[1], dim, 128)
    w2, b2 = linear(ks[2], ks[3], 128, 64)
    w3, b3 = linear(ks[4], ks[5], 64, 32)
    w4, b4 = linear(ks[6], ks[7], 32, k)
    return dict(
        w1=w1, b1=b1,                                   # layer 1 stays f32 (VPU path)
        w2=w2.astype(jnp.bfloat16), b2=b2,
        w3=w3.astype(jnp.bfloat16), b3=b3,
        w4=w4.astype(jnp.bfloat16), b4=b4,
        w2_f32=w2, w3_f32=w3, w4_f32=w4,                # f32 masters for reference
    )


def decoder_reference_f32(x, p):
    """Pure-f32 reference (original PyTorch semantics)."""
    h = jnp.tanh(x @ p["w1"].T + p["b1"].T)
    h = jnp.tanh(h @ p["w2_f32"].T + p["b2"].T)
    h = jnp.tanh(h @ p["w3_f32"].T + p["b3"].T)
    return h @ p["w4_f32"].T + p["b4"].T


def decoder_reference_mixed(x, p, act_dtype):
    """Reference mirroring the kernel arithmetic (bf16 MXU operands, f32 acc,
    tanh in act_dtype)."""
    f32 = jnp.float32

    def act(h):
        return jnp.tanh(h.astype(act_dtype))

    h = act(x @ p["w1"].T + p["b1"].T)
    h = act(jnp.dot(h.astype(jnp.bfloat16), p["w2"].T,
                    preferred_element_type=f32) + p["b2"].T)
    h = act(jnp.dot(h.astype(jnp.bfloat16), p["w3"].T,
                    preferred_element_type=f32) + p["b3"].T)
    return jnp.dot(h.astype(jnp.bfloat16), p["w4"].T,
                   preferred_element_type=f32) + p["b4"].T


# --------------------------------------------------------------------------- #
# Self-test
# --------------------------------------------------------------------------- #
if __name__ == "__main__":
    dim = 2
    k = 4
    batch = 8

    key = jax.random.PRNGKey(0)
    kx, kp = jax.random.split(key)
    x = jax.random.normal(kx, (batch, dim), jnp.float32)
    params = init_params(kp, dim, k)

    act_dtype = _default_act_dtype()

    # PyTorch-layout path (original module semantics).
    out = decoder_forward(x, params, act_dtype=act_dtype)
    out = jax.block_until_ready(out)
    assert out.shape == (batch, k)

    ref_mixed = decoder_reference_mixed(x, params, act_dtype)
    ref_f32 = decoder_reference_f32(x, params)
    mixed_tol = 1e-4 if act_dtype == jnp.float32 else 2e-2
    assert jnp.allclose(out, ref_mixed, atol=mixed_tol, rtol=mixed_tol), \
        "mismatch vs mixed-precision reference"
    assert jnp.allclose(out, ref_f32, atol=5e-2, rtol=5e-2), \
        "mismatch vs f32 reference"

    # Transpose-free path gives the same numbers.
    out_cm = decoder_forward_colmajor(x.T, params, act_dtype=act_dtype)
    out_cm = jax.block_until_ready(out_cm)
    assert out_cm.shape == (k, batch)
    assert jnp.allclose(out_cm.T, out), "column-major path mismatch"

    print("KERNEL_OK")
</pallas_src>

<mosaic_0001>
module attributes {stable_mosaic.version = 11 : i64} {
  func.func @decoder_kernel(%arg0: i32, %arg1: memref<2x128xf32, #tpu.memory_space<vmem>>, %arg2: memref<128x2xf32, #tpu.memory_space<vmem>>, %arg3: memref<128x1xf32, #tpu.memory_space<vmem>>, %arg4: memref<64x128xbf16, #tpu.memory_space<vmem>>, %arg5: memref<64x1xf32, #tpu.memory_space<vmem>>, %arg6: memref<32x64xbf16, #tpu.memory_space<vmem>>, %arg7: memref<32x1xf32, #tpu.memory_space<vmem>>, %arg8: memref<4x32xbf16, #tpu.memory_space<vmem>>, %arg9: memref<4x1xf32, #tpu.memory_space<vmem>>, %arg10: memref<4x128xf32, #tpu.memory_space<vmem>>) attributes {dimension_semantics = [#tpu.dimension_semantics<parallel>], iteration_bounds = array<i64: 1>, scalar_prefetch = 0 : i64, scratch_operands = 0 : i64, tpu.core_type = #tpu.core_type<tc>, window_params = [{transform_indices = @transform_0, window_bounds = array<i64: 2, 128>}, {pipeline_mode = #tpu.pipeline_mode<synchronous>, transform_indices = @transform_1, window_bounds = array<i64: 128, 2>}, {pipeline_mode = #tpu.pipeline_mode<synchronous>, transform_indices = @transform_2, window_bounds = array<i64: 128, 1>}, {pipeline_mode = #tpu.pipeline_mode<synchronous>, transform_indices = @transform_3, window_bounds = array<i64: 64, 128>}, {pipeline_mode = #tpu.pipeline_mode<synchronous>, transform_indices = @transform_4, window_bounds = array<i64: 64, 1>}, {pipeline_mode = #tpu.pipeline_mode<synchronous>, transform_indices = @transform_5, window_bounds = array<i64: 32, 64>}, {pipeline_mode = #tpu.pipeline_mode<synchronous>, transform_indices = @transform_6, window_bounds = array<i64: 32, 1>}, {pipeline_mode = #tpu.pipeline_mode<synchronous>, transform_indices = @transform_7, window_bounds = array<i64: 4, 32>}, {pipeline_mode = #tpu.pipeline_mode<synchronous>, transform_indices = @transform_8, window_bounds = array<i64: 4, 1>}, {transform_indices = @transform_9, window_bounds = array<i64: 4, 128>}]} {
    %c0 = arith.constant 0 : index
    %c0_0 = arith.constant 0 : index
    %0 = vector.load %arg1[%c0, %c0_0] : memref<2x128xf32, #tpu.memory_space<vmem>>, vector<2x128xf32>
    %c0_1 = arith.constant 0 : index
    %c0_2 = arith.constant 0 : index
    %1 = vector.load %arg2[%c0_1, %c0_2] : memref<128x2xf32, #tpu.memory_space<vmem>>, vector<128x2xf32>
    %2 = vector.extract_strided_slice %1 {offsets = [0, 0], sizes = [128, 1], strides = [1, 1]} : vector<128x2xf32> to vector<128x1xf32>
    %3 = vector.extract_strided_slice %0 {offsets = [0, 0], sizes = [1, 128], strides = [1, 1]} : vector<2x128xf32> to vector<1x128xf32>
    %4 = vector.broadcast %2 : vector<128x1xf32> to vector<128x128xf32>
    %5 = vector.broadcast %3 : vector<1x128xf32> to vector<128x128xf32>
    %6 = arith.mulf %4, %5 : vector<128x128xf32>
    %7 = vector.extract_strided_slice %1 {offsets = [0, 1], sizes = [128, 1], strides = [1, 1]} : vector<128x2xf32> to vector<128x1xf32>
    %8 = vector.extract_strided_slice %0 {offsets = [1, 0], sizes = [1, 128], strides = [1, 1]} : vector<2x128xf32> to vector<1x128xf32>
    %9 = vector.broadcast %7 : vector<128x1xf32> to vector<128x128xf32>
    %10 = vector.broadcast %8 : vector<1x128xf32> to vector<128x128xf32>
    %11 = arith.mulf %9, %10 : vector<128x128xf32>
    %12 = arith.addf %6, %11 : vector<128x128xf32>
    %c0_3 = arith.constant 0 : index
    %c0_4 = arith.constant 0 : index
    %13 = vector.load %arg3[%c0_3, %c0_4] : memref<128x1xf32, #tpu.memory_space<vmem>>, vector<128x1xf32>
    %14 = vector.broadcast %13 : vector<128x1xf32> to vector<128x128xf32>
    %15 = arith.addf %12, %14 : vector<128x128xf32>
    %16 = math.tanh %15 : vector<128x128xf32>
    %c0_5 = arith.constant 0 : index
    %c0_6 = arith.constant 0 : index
    %17 = vector.load %arg4[%c0_5, %c0_6] : memref<64x128xbf16, #tpu.memory_space<vmem>>, vector<64x128xbf16>
    %18 = arith.truncf %16 : vector<128x128xf32> to vector<128x128xbf16>
    %cst = arith.constant dense<0.000000e+00> : vector<64x128xf32>
    %19 = tpu.matmul %17, %18, %cst {dimension_numbers = #tpu.dot_dimension_numbers<[1], [0], [0], [1], [0, 0, 1, 1], [], []>} : vector<64x128xbf16>, vector<128x128xbf16>, vector<64x128xf32> -> vector<64x128xf32>
    %c0_7 = arith.constant 0 : index
    %c0_8 = arith.constant 0 : index
    %20 = vector.load %arg5[%c0_7, %c0_8] : memref<64x1xf32, #tpu.memory_space<vmem>>, vector<64x1xf32>
    %21 = vector.broadcast %20 : vector<64x1xf32> to vector<64x128xf32>
    %22 = arith.addf %19, %21 : vector<64x128xf32>
    %23 = math.tanh %22 : vector<64x128xf32>
    %c0_9 = arith.constant 0 : index
    %c0_10 = arith.constant 0 : index
    %24 = vector.load %arg6[%c0_9, %c0_10] : memref<32x64xbf16, #tpu.memory_space<vmem>>, vector<32x64xbf16>
    %25 = arith.truncf %23 : vector<64x128xf32> to vector<64x128xbf16>
    %cst_11 = arith.constant dense<0.000000e+00> : vector<32x128xf32>
    %26 = tpu.matmul %24, %25, %cst_11 {dimension_numbers = #tpu.dot_dimension_numbers<[1], [0], [0], [1], [0, 0, 1, 1], [], []>} : vector<32x64xbf16>, vector<64x128xbf16>, vector<32x128xf32> -> vector<32x128xf32>
    %c0_12 = arith.constant 0 : index
    %c0_13 = arith.constant 0 : index
    %27 = vector.load %arg7[%c0_12, %c0_13] : memref<32x1xf32, #tpu.memory_space<vmem>>, vector<32x1xf32>
    %28 = vector.broadcast %27 : vector<32x1xf32> to vector<32x128xf32>
    %29 = arith.addf %26, %28 : vector<32x128xf32>
    %30 = math.tanh %29 : vector<32x128xf32>
    %c0_14 = arith.constant 0 : index
    %c0_15 = arith.constant 0 : index
    %31 = vector.load %arg8[%c0_14, %c0_15] : memref<4x32xbf16, #tpu.memory_space<vmem>>, vector<4x32xbf16>
    %32 = arith.truncf %30 : vector<32x128xf32> to vector<32x128xbf16>
    %cst_16 = arith.constant dense<0.000000e+00> : vector<4x128xf32>
    %33 = tpu.matmul %31, %32, %cst_16 {dimension_numbers = #tpu.dot_dimension_numbers<[1], [0], [0], [1], [0, 0, 1, 1], [], []>} : vector<4x32xbf16>, vector<32x128xbf16>, vector<4x128xf32> -> vector<4x128xf32>
    %c0_17 = arith.constant 0 : index
    %c0_18 = arith.constant 0 : index
    %34 = vector.load %arg9[%c0_17, %c0_18] : memref<4x1xf32, #tpu.memory_space<vmem>>, vector<4x1xf32>
    %35 = vector.broadcast %34 : vector<4x1xf32> to vector<4x128xf32>
    %36 = arith.addf %33, %35 : vector<4x128xf32>
    %c0_19 = arith.constant 0 : index
    %c0_20 = arith.constant 0 : index
    %37 = vector.load %arg10[%c0_19, %c0_20] : memref<4x128xf32, #tpu.memory_space<vmem>>, vector<4x128xf32>
    tpu.vector_store %arg10[%c0_19, %c0_20], %36 {strides = array<i32>} : memref<4x128xf32, #tpu.memory_space<vmem>>, vector<4x128xf32>,
    return
  }
  func.func @transform_0(%arg0: i32) -> (i32, i32) {
    %c0_i32 = arith.constant 0 : i32
    %c0_i32_0 = arith.constant 0 : i32
    return %c0_i32, %arg0 : i32, i32
  }
  func.func @transform_1(%arg0: i32) -> (i32, i32) {
    %c0_i32 = arith.constant 0 : i32
    %c0_i32_0 = arith.constant 0 : i32
    %c0_i32_1 = arith.constant 0 : i32
    return %c0_i32, %c0_i32_0 : i32, i32
  }
  func.func @transform_2(%arg0: i32) -> (i32, i32) {
    %c0_i32 = arith.constant 0 : i32
    %c0_i32_0 = arith.constant 0 : i32
    %c0_i32_1 = arith.constant 0 : i32
    return %c0_i32, %c0_i32_0 : i32, i32
  }
  func.func @transform_3(%arg0: i32) -> (i32, i32) {
    %c0_i32 = arith.constant 0 : i32
    %c0_i32_0 = arith.constant 0 : i32
    %c0_i32_1 = arith.constant 0 : i32
    return %c0_i32, %c0_i32_0 : i32, i32
  }
  func.func @transform_4(%arg0: i32) -> (i32, i32) {
    %c0_i32 = arith.constant 0 : i32
    %c0_i32_0 = arith.constant 0 : i32
    %c0_i32_1 = arith.constant 0 : i32
    return %c0_i32, %c0_i32_0 : i32, i32
  }
  func.func @transform_5(%arg0: i32) -> (i32, i32) {
    %c0_i32 = arith.constant 0 : i32
    %c0_i32_0 = arith.constant 0 : i32
    %c0_i32_1 = arith.constant 0 : i32
    return %c0_i32, %c0_i32_0 : i32, i32
  }
  func.func @transform_6(%arg0: i32) -> (i32, i32) {
    %c0_i32 = arith.constant 0 : i32
    %c0_i32_0 = arith.constant 0 : i32
    %c0_i32_1 = arith.constant 0 : i32
    return %c0_i32, %c0_i32_0 : i32, i32
  }
  func.func @transform_7(%arg0: i32) -> (i32, i32) {
    %c0_i32 = arith.constant 0 : i32
    %c0_i32_0 = arith.constant 0 : i32
    %c0_i32_1 = arith.constant 0 : i32
    return %c0_i32, %c0_i32_0 : i32, i32
  }
  func.func @transform_8(%arg0: i32) -> (i32, i32) {
    %c0_i32 = arith.constant 0 : i32
    %c0_i32_0 = arith.constant 0 : i32
    %c0_i32_1 = arith.constant 0 : i32
    return %c0_i32, %c0_i32_0 : i32, i32
  }
  func.func @transform_9(%arg0: i32) -> (i32, i32) {
    %c0_i32 = arith.constant 0 : i32
    %c0_i32_0 = arith.constant 0 : i32
    return %c0_i32, %arg0 : i32, i32
  }
}

</mosaic_0001>

<llo_original>
// kernel: tpu_custom_call.1
$region0: #{tpu_custom_call.1}
  #allocation0 [shape = 'u32[]', space=smem, size = 0x4, offset = 0x4, fixed_abs, tag = 'smem constant byte address 0x4 - core index']
  #allocation1 [shape = 'u32[144,128]{1,0:T(1,128)}', space=vmem, size = 0x12000, scoped, tag = 'internal scratch']
  %s0 = inlined_call_operand.vmem [shape: f32[2,128], index: 0, kind: input, shape index: {}]
  %s1 = inlined_call_operand.vmem [shape: f32[128,2], index: 1, kind: input, shape index: {}]
  %s2 = inlined_call_operand.vmem [shape: f32[128,1], index: 2, kind: input, shape index: {}]
  %s3 = inlined_call_operand.vmem [shape: bf16[64,128], index: 3, kind: input, shape index: {}]
  %s4 = inlined_call_operand.vmem [shape: f32[64,1], index: 4, kind: input, shape index: {}]
  %s5 = inlined_call_operand.vmem [shape: bf16[32,64], index: 5, kind: input, shape index: {}]
  %s6 = inlined_call_operand.vmem [shape: f32[32,1], index: 6, kind: input, shape index: {}]
  %s7 = inlined_call_operand.vmem [shape: bf16[4,32], index: 7, kind: input, shape index: {}]
  %s8 = inlined_call_operand.vmem [shape: f32[4,1], index: 8, kind: input, shape index: {}]
  %s9 = inlined_call_operand.hbm [shape: f32[4,128], index: 9, kind: output, shape index: {}]
  %s10 = sld [smem:[#allocation0]]
  $region46: #{tpu_custom_call.1} parent=0
    _
  %s12 = ssub.s32 1, %s10
  %s13 = scalar_select 0, %s12, %s10
  $region1: #{tpu_custom_call.1} parent=0
    #allocation2 [shape = 'u8[2048]{0}', space=vmem, size = 0x800, scoped, tag = 'output window, operand 0, single buffered']
    #allocation3 [shape = 's32[1]{0}', space=sflag, size = 0x4, scoped, tag = 'scoped memory for tpu_custom_call.1']
    %14 = vsyncpa [#allocation3], 0
    // Predicated region
    $region2: #{tpu_custom_call.1} parent=1 // pred_check
      _
    $region3: #{tpu_custom_call.1} parent=1 // pred_check_branch
      %16 = sbr.rel (0) target = $region5
    $region4: #{tpu_custom_call.1} parent=1 // pred_region
      _
    $region5: #{tpu_custom_call.1} parent=1 // pred_fallthru
      _
    // Predicated region
    $region6: #{tpu_custom_call.1} parent=1 // pred_check
      _
    $region7: #{tpu_custom_call.1} parent=1 // pred_check_branch
      %18 = sbr.rel (0) target = $region9
    $region8: #{tpu_custom_call.1} parent=1 // pred_region
      _
    $region9: #{tpu_custom_call.1} parent=1 // pred_fallthru
      _
    // Predicated region
    $region10: #{tpu_custom_call.1} parent=1 // pred_check
      _
    $region11: #{tpu_custom_call.1} parent=1 // pred_check_branch
      %20 = sbr.rel (0) target = $region13
    $region12: #{tpu_custom_call.1} parent=1 // pred_region
      _
    $region13: #{tpu_custom_call.1} parent=1 // pred_fallthru
      _
    // Predicated region
    $region14: #{tpu_custom_call.1} parent=1 // pred_check
      _
    $region15: #{tpu_custom_call.1} parent=1 // pred_check_branch
      %22 = sbr.rel (0) target = $region17
    $region16: #{tpu_custom_call.1} parent=1 // pred_region
      _
    $region17: #{tpu_custom_call.1} parent=1 // pred_fallthru
      _
    // Predicated region
    $region18: #{tpu_custom_call.1} parent=1 // pred_check
      _
    $region19: #{tpu_custom_call.1} parent=1 // pred_check_branch
      %24 = sbr.rel (0) target = $region21
    $region20: #{tpu_custom_call.1} parent=1 // pred_region
      _
    $region21: #{tpu_custom_call.1} parent=1 // pred_fallthru
      _
    // Predicated region
    $region22: #{tpu_custom_call.1} parent=1 // pred_check
      _
    $region23: #{tpu_custom_call.1} parent=1 // pred_check_branch
      %26 = sbr.rel (0) target = $region25
    $region24: #{tpu_custom_call.1} parent=1 // pred_region
      _
    $region25: #{tpu_custom_call.1} parent=1 // pred_fallthru
      _
    // Predicated region
    $region26: #{tpu_custom_call.1} parent=1 // pred_check
      _
    $region27: #{tpu_custom_call.1} parent=1 // pred_check_branch
      %28 = sbr.rel (0) target = $region29
    $region28: #{tpu_custom_call.1} parent=1 // pred_region
      _
    $region29: #{tpu_custom_call.1} parent=1 // pred_fallthru
      _
    // Predicated region
    $region30: #{tpu_custom_call.1} parent=1 // pred_check
      _
    $region31: #{tpu_custom_call.1} parent=1 // pred_check_branch
      %30 = sbr.rel (0) target = $region33
    $region32: #{tpu_custom_call.1} parent=1 // pred_region
      _
    $region33: #{tpu_custom_call.1} parent=1 // pred_fallthru
      _
    // Predicated region
    $region34: #{tpu_custom_call.1} parent=1 // pred_check
      _
    $region35: #{tpu_custom_call.1} parent=1 // pred_check_branch
      %32 = sbr.rel (0) target = $region37
    $region36: #{tpu_custom_call.1} parent=1 // pred_region
      _
    $region37: #{tpu_custom_call.1} parent=1 // pred_fallthru
      _
    %v34 = vld [vmem:[%s0] sm:$0x3]
    %v35 = vld [vmem:[%s1] sm:$0xff]
    %v36 = vld [vmem:[%s1 + $0x8] sm:$0xff]
    %v37 = vld [vmem:[%s1 + $0x10] sm:$0xff]
    %v38 = vld [vmem:[%s1 + $0x18] sm:$0xff]
    %v39 = vld [vmem:[%s1 + $0x20] sm:$0xff]
    %v40 = vld [vmem:[%s1 + $0x28] sm:$0xff]
    %v41 = vld [vmem:[%s1 + $0x30] sm:$0xff]
    %v42 = vld [vmem:[%s1 + $0x38] sm:$0xff]
    %v43 = vld [vmem:[%s1 + $0x40] sm:$0xff]
    %v44 = vld [vmem:[%s1 + $0x48] sm:$0xff]
    %v45 = vld [vmem:[%s1 + $0x50] sm:$0xff]
    %v46 = vld [vmem:[%s1 + $0x58] sm:$0xff]
    %v47 = vld [vmem:[%s1 + $0x60] sm:$0xff]
    %v48 = vld [vmem:[%s1 + $0x68] sm:$0xff]
    %v49 = vld [vmem:[%s1 + $0x70] sm:$0xff]
    %v50 = vld [vmem:[%s1 + $0x78] sm:$0xff]
    %52 = vset.pattern.permute.xlu0 0
    %53 = vperm.xlu0 %52, %v35
    %v54 = vpop.permute.xlu0 %53
    %57 = vset.pattern.permute.xlu0 0
    %58 = vperm.xlu0 %57, %v36
    %v59 = vpop.permute.xlu0 %58
    %62 = vset.pattern.permute.xlu0 0
    %63 = vperm.xlu0 %62, %v37
    %v64 = vpop.permute.xlu0 %63
    %67 = vset.pattern.permute.xlu0 0
    %68 = vperm.xlu0 %67, %v38
    %v69 = vpop.permute.xlu0 %68
    %72 = vset.pattern.permute.xlu0 0
    %73 = vperm.xlu0 %72, %v39
    %v74 = vpop.permute.xlu0 %73
    %77 = vset.pattern.permute.xlu0 0
    %78 = vperm.xlu0 %77, %v40
    %v79 = vpop.permute.xlu0 %78
    %82 = vset.pattern.permute.xlu0 0
    %83 = vperm.xlu0 %82, %v41
    %v84 = vpop.permute.xlu0 %83
    %87 = vset.pattern.permute.xlu0 0
    %88 = vperm.xlu0 %87, %v42
    %v89 = vpop.permute.xlu0 %88
    %92 = vset.pattern.permute.xlu0 0
    %93 = vperm.xlu0 %92, %v43
    %v94 = vpop.permute.xlu0 %93
    %97 = vset.pattern.permute.xlu0 0
    %98 = vperm.xlu0 %97, %v44
    %v99 = vpop.permute.xlu0 %98
    %102 = vset.pattern.permute.xlu0 0
    %103 = vperm.xlu0 %102, %v45
    %v104 = vpop.permute.xlu0 %103
    %107 = vset.pattern.permute.xlu0 0
    %108 = vperm.xlu0 %107, %v46
    %v109 = vpop.permute.xlu0 %108
    %112 = vset.pattern.permute.xlu0 0
    %113 = vperm.xlu0 %112, %v47
    %v114 = vpop.permute.xlu0 %113
    %117 = vset.pattern.permute.xlu0 0
    %118 = vperm.xlu0 %117, %v48
    %v119 = vpop.permute.xlu0 %118
    %122 = vset.pattern.permute.xlu0 0
    %123 = vperm.xlu0 %122, %v49
    %v124 = vpop.permute.xlu0 %123
    %127 = vset.pattern.permute.xlu0 0
    %128 = vperm.xlu0 %127, %v50
    %v129 = vpop.permute.xlu0 %128
    %v131 = vlaneseq
    %v132 = vshrl.u32 %v131, 7
    %v133 = vsub.s32 0, %v132
    %v134 = vrot.slane %v34, %v133
    %v135 = vmul.f32 %v54, %v134
    %v136 = vmul.f32 %v59, %v134
    %v137 = vmul.f32 %v64, %v134
    %v138 = vmul.f32 %v69, %v134
    %v139 = vmul.f32 %v74, %v134
    %v140 = vmul.f32 %v79, %v134
    %v141 = vmul.f32 %v84, %v134
    %v142 = vmul.f32 %v89, %v134
    %v143 = vmul.f32 %v94, %v134
    %v144 = vmul.f32 %v99, %v134
    %v145 = vmul.f32 %v104, %v134
    %v146 = vmul.f32 %v109, %v134
    %v147 = vmul.f32 %v114, %v134
    %v148 = vmul.f32 %v119, %v134
    %v149 = vmul.f32 %v124, %v134
    %v150 = vmul.f32 %v129, %v134
    %151 = vset.pattern.permute.xlu0 1
    %152 = vperm.xlu0 %151, %v35
    %v153 = vpop.permute.xlu0 %152
    %155 = vset.pattern.permute.xlu0 1
    %156 = vperm.xlu0 %155, %v36
    %v157 = vpop.permute.xlu0 %156
    %159 = vset.pattern.permute.xlu0 1
    %160 = vperm.xlu0 %159, %v37
    %v161 = vpop.permute.xlu0 %160
    %163 = vset.pattern.permute.xlu0 1
    %164 = vperm.xlu0 %163, %v38
    %v165 = vpop.permute.xlu0 %164
    %167 = vset.pattern.permute.xlu0 1
    %168 = vperm.xlu0 %167, %v39
    %v169 = vpop.permute.xlu0 %168
    %171 = vset.pattern.permute.xlu0 1
    %172 = vperm.xlu0 %171, %v40
    %v173 = vpop.permute.xlu0 %172
    %175 = vset.pattern.permute.xlu0 1
    %176 = vperm.xlu0 %175, %v41
    %v177 = vpop.permute.xlu0 %176
    %179 = vset.pattern.permute.xlu0 1
    %180 = vperm.xlu0 %179, %v42
    %v181 = vpop.permute.xlu0 %180
    %183 = vset.pattern.permute.xlu0 1
    %184 = vperm.xlu0 %183, %v43
    %v185 = vpop.permute.xlu0 %184
    %187 = vset.pattern.permute.xlu0 1
    %188 = vperm.xlu0 %187, %v44
    %v189 = vpop.permute.xlu0 %188
    %191 = vset.pattern.permute.xlu0 1
    %192 = vperm.xlu0 %191, %v45
    %v193 = vpop.permute.xlu0 %192
    %195 = vset.pattern.permute.xlu0 1
    %196 = vperm.xlu0 %195, %v46
    %v197 = vpop.permute.xlu0 %196
    %199 = vset.pattern.permute.xlu0 1
    %200 = vperm.xlu0 %199, %v47
    %v201 = vpop.permute.xlu0 %200
    %203 = vset.pattern.permute.xlu0 1
    %204 = vperm.xlu0 %203, %v48
    %v205 = vpop.permute.xlu0 %204
    %207 = vset.pattern.permute.xlu0 1
    %208 = vperm.xlu0 %207, %v49
    %v209 = vpop.permute.xlu0 %208
    %211 = vset.pattern.permute.xlu0 1
    %212 = vperm.xlu0 %211, %v50
    %v213 = vpop.permute.xlu0 %212
    %v215 = vlaneseq
    %v216 = vshrl.u32 %v215, 7
    %v217 = vsub.s32 1, %v216
    %v218 = vrot.slane %v34, %v217
    %v219 = vmul.f32 %v153, %v218
    %v220 = vmul.f32 %v157, %v218
    %v221 = vmul.f32 %v161, %v218
    %v222 = vmul.f32 %v165, %v218
    %v223 = vmul.f32 %v169, %v218
    %v224 = vmul.f32 %v173, %v218
    %v225 = vmul.f32 %v177, %v218
    %v226 = vmul.f32 %v181, %v218
    %v227 = vmul.f32 %v185, %v218
    %v228 = vmul.f32 %v189, %v218
    %v229 = vmul.f32 %v193, %v218
    %v230 = vmul.f32 %v197, %v218
    %v231 = vmul.f32 %v201, %v218
    %v232 = vmul.f32 %v205, %v218
    %v233 = vmul.f32 %v209, %v218
    %v234 = vmul.f32 %v213, %v218
    %v235 = vadd.f32 %v135, %v219
    %v236 = vadd.f32 %v136, %v220
    %v237 = vadd.f32 %v137, %v221
    %v238 = vadd.f32 %v138, %v222
    %v239 = vadd.f32 %v139, %v223
    %v240 = vadd.f32 %v140, %v224
    %v241 = vadd.f32 %v141, %v225
    %v242 = vadd.f32 %v142, %v226
    %v243 = vadd.f32 %v143, %v227
    %v244 = vadd.f32 %v144, %v228
    %v245 = vadd.f32 %v145, %v229
    %v246 = vadd.f32 %v146, %v230
    %v247 = vadd.f32 %v147, %v231
    %v248 = vadd.f32 %v148, %v232
    %v249 = vadd.f32 %v149, %v233
    %v250 = vadd.f32 %v150, %v234
    %v251 = vld [vmem:[%s2] sm:$0xff]
    %v252 = vld [vmem:[%s2 + $0x8] sm:$0xff]
    %v253 = vld [vmem:[%s2 + $0x10] sm:$0xff]
    %v254 = vld [vmem:[%s2 + $0x18] sm:$0xff]
    %v255 = vld [vmem:[%s2 + $0x20] sm:$0xff]
    %v256 = vld [vmem:[%s2 + $0x28] sm:$0xff]
    %v257 = vld [vmem:[%s2 + $0x30] sm:$0xff]
    %v258 = vld [vmem:[%s2 + $0x38] sm:$0xff]
    %v259 = vld [vmem:[%s2 + $0x40] sm:$0xff]
    %v260 = vld [vmem:[%s2 + $0x48] sm:$0xff]
    %v261 = vld [vmem:[%s2 + $0x50] sm:$0xff]
    %v262 = vld [vmem:[%s2 + $0x58] sm:$0xff]
    %v263 = vld [vmem:[%s2 + $0x60] sm:$0xff]
    %v264 = vld [vmem:[%s2 + $0x68] sm:$0xff]
    %v265 = vld [vmem:[%s2 + $0x70] sm:$0xff]
    %v266 = vld [vmem:[%s2 + $0x78] sm:$0xff]
    %268 = vset.pattern.permute.xlu0 0
    %269 = vperm.xlu0 %268, %v251
    %v270 = vpop.permute.xlu0 %269
    %273 = vset.pattern.permute.xlu0 0
    %274 = vperm.xlu0 %273, %v252
    %v275 = vpop.permute.xlu0 %274
    %278 = vset.pattern.permute.xlu0 0
    %279 = vperm.xlu0 %278, %v253
    %v280 = vpop.permute.xlu0 %279
    %283 = vset.pattern.permute.xlu0 0
    %284 = vperm.xlu0 %283, %v254
    %v285 = vpop.permute.xlu0 %284
    %288 = vset.pattern.permute.xlu0 0
    %289 = vperm.xlu0 %288, %v255
    %v290 = vpop.permute.xlu0 %289
    %293 = vset.pattern.permute.xlu0 0
    %294 = vperm.xlu0 %293, %v256
    %v295 = vpop.permute.xlu0 %294
    %298 = vset.pattern.permute.xlu0 0
    %299 = vperm.xlu0 %298, %v257
    %v300 = vpop.permute.xlu0 %299
    %303 = vset.pattern.permute.xlu0 0
    %304 = vperm.xlu0 %303, %v258
    %v305 = vpop.permute.xlu0 %304
    %308 = vset.pattern.permute.xlu0 0
    %309 = vperm.xlu0 %308, %v259
    %v310 = vpop.permute.xlu0 %309
    %313 = vset.pattern.permute.xlu0 0
    %314 = vperm.xlu0 %313, %v260
    %v315 = vpop.permute.xlu0 %314
    %318 = vset.pattern.permute.xlu0 0
    %319 = vperm.xlu0 %318, %v261
    %v320 = vpop.permute.xlu0 %319
    %323 = vset.pattern.permute.xlu0 0
    %324 = vperm.xlu0 %323, %v262
    %v325 = vpop.permute.xlu0 %324
    %328 = vset.pattern.permute.xlu0 0
    %329 = vperm.xlu0 %328, %v263
    %v330 = vpop.permute.xlu0 %329
    %333 = vset.pattern.permute.xlu0 0
    %334 = vperm.xlu0 %333, %v264
    %v335 = vpop.permute.xlu0 %334
    %338 = vset.pattern.permute.xlu0 0
    %339 = vperm.xlu0 %338, %v265
    %v340 = vpop.permute.xlu0 %339
    %343 = vset.pattern.permute.xlu0 0
    %344 = vperm.xlu0 %343, %v266
    %v345 = vpop.permute.xlu0 %344
    %v347 = vadd.f32 %v235, %v270
    %v348 = vadd.f32 %v236, %v275
    %v349 = vadd.f32 %v237, %v280
    %v350 = vadd.f32 %v238, %v285
    %v351 = vadd.f32 %v239, %v290
    %v352 = vadd.f32 %v240, %v295
    %v353 = vadd.f32 %v241, %v300
    %v354 = vadd.f32 %v242, %v305
    %v355 = vadd.f32 %v243, %v310
    %v356 = vadd.f32 %v244, %v315
    %v357 = vadd.f32 %v245, %v320
    %v358 = vadd.f32 %v246, %v325
    %v359 = vadd.f32 %v247, %v330
    %v360 = vadd.f32 %v248, %v335
    %v361 = vadd.f32 %v249, %v340
    %v362 = vadd.f32 %v250, %v345
    %v363 = vtanh.pop %v347
    %v364 = vtanh.pop %v348
    %v365 = vtanh.pop %v349
    %v366 = vtanh.pop %v350
    %v367 = vtanh.pop %v351
    %v368 = vtanh.pop %v352
    %v369 = vtanh.pop %v353
    %v370 = vtanh.pop %v354
    %v371 = vtanh.pop %v355
    %v372 = vtanh.pop %v356
    %v373 = vtanh.pop %v357
    %v374 = vtanh.pop %v358
    %v375 = vtanh.pop %v359
    %v376 = vtanh.pop %v360
    %v377 = vtanh.pop %v361
    %v378 = vtanh.pop %v362
    %v379 = vld [vmem:[%s3] sm:$0xf]
    %v380 = vld [vmem:[%s3 + $0x4] sm:$0xf]
    %v381 = vld [vmem:[%s3 + $0x8] sm:$0xf]
    %v382 = vld [vmem:[%s3 + $0xc] sm:$0xf]
    %v383 = vld [vmem:[%s3 + $0x10] sm:$0xf]
    %v384 = vld [vmem:[%s3 + $0x14] sm:$0xf]
    %v385 = vld [vmem:[%s3 + $0x18] sm:$0xf]
    %v386 = vld [vmem:[%s3 + $0x1c] sm:$0xf]
    %v387 = vpack.c.bf16 %v364, %v363
    %v388 = vpack.c.bf16 %v366, %v365
    %v389 = vpack.c.bf16 %v368, %v367
    %v390 = vpack.c.bf16 %v370, %v369
    %v391 = vpack.c.bf16 %v372, %v371
    %v392 = vpack.c.bf16 %v374, %v373
    %v393 = vpack.c.bf16 %v376, %v375
    %v394 = vpack.c.bf16 %v378, %v377
    %v395 = vld [vmem:[%s4] sm:$0xff]
    %v396 = vld [vmem:[%s4 + $0x8] sm:$0xff]
    %v397 = vld [vmem:[%s4 + $0x10] sm:$0xff]
    %v398 = vld [vmem:[%s4 + $0x18] sm:$0xff]
    %v399 = vld [vmem:[%s4 + $0x20] sm:$0xff]
    %v400 = vld [vmem:[%s4 + $0x28] sm:$0xff]
    %v401 = vld [vmem:[%s4 + $0x30] sm:$0xff]
    %v402 = vld [vmem:[%s4 + $0x38] sm:$0xff]
    %404 = vset.pattern.permute.xlu0 0
    %405 = vperm.xlu0 %404, %v395
    %v406 = vpop.permute.xlu0 %405
    %409 = vset.pattern.permute.xlu0 0
    %410 = vperm.xlu0 %409, %v396
    %v411 = vpop.permute.xlu0 %410
    %414 = vset.pattern.permute.xlu0 0
    %415 = vperm.xlu0 %414, %v397
    %v416 = vpop.permute.xlu0 %415
    %419 = vset.pattern.permute.xlu0 0
    %420 = vperm.xlu0 %419, %v398
    %v421 = vpop.permute.xlu0 %420
    %424 = vset.pattern.permute.xlu0 0
    %425 = vperm.xlu0 %424, %v399
    %v426 = vpop.permute.xlu0 %425
    %429 = vset.pattern.permute.xlu0 0
    %430 = vperm.xlu0 %429, %v400
    %v431 = vpop.permute.xlu0 %430
    %434 = vset.pattern.permute.xlu0 0
    %435 = vperm.xlu0 %434, %v401
    %v436 = vpop.permute.xlu0 %435
    %439 = vset.pattern.permute.xlu0 0
    %440 = vperm.xlu0 %439, %v402
    %v441 = vpop.permute.xlu0 %440
    %v451 = vunpack.c.l.b16 %v379
    %v452 = vunpack.c.l.b16 %v380
    %v453 = vunpack.c.l.b16 %v381
    %v454 = vunpack.c.l.b16 %v382
    %v455 = vunpack.c.l.b16 %v383
    %v456 = vunpack.c.l.b16 %v384
    %v457 = vunpack.c.l.b16 %v385
    %v458 = vunpack.c.l.b16 %v386
    %v459 = vpack.c.b16 %v452, %v451
    %v460 = vpack.c.b16 %v454, %v453
    %v461 = vpack.c.b16 %v456, %v455
    %v462 = vpack.c.b16 %v458, %v457
    %467 = vmatprep.subr.bf16.mxu0 0
    %468 = vmatpush1.bf16.msra.mxu0 %v387
    %469 = vmatprep.subr.bf16.mxu0 0
    %470 = vmatpush1.bf16.msra.mxu0 %v388
    %471 = vmatprep.subr.bf16.mxu0 0
    %472 = vmatpush1.bf16.msra.mxu0 %v389
    %473 = vmatprep.subr.bf16.mxu0 0
    %474 = vmatpush1.bf16.msra.mxu0 %v390
    %475 = vmatprep.subr.bf16.mxu0 0
    %476 = vmatpush1.bf16.msra.mxu0 %v391
    %477 = vmatprep.subr.bf16.mxu0 0
    %478 = vmatpush1.bf16.msra.mxu0 %v392
    %479 = vmatprep.subr.bf16.mxu0 0
    %480 = vmatpush1.bf16.msra.mxu0 %v393
    %481 = vmatprep.subr.bf16.mxu0 0
    %482 = vmatpush1.bf16.msra.mxu0 %v394
    %483 = vmatprep.subr.bf16.mxu0 0
    %484 = vmatpush1.bf16.msra.mxu0 0
    %485 = vmatprep.subr.bf16.mxu0 0
    %486 = vmatpush1.bf16.msra.mxu0 0
    %487 = vmatprep.subr.bf16.mxu0 0
    %488 = vmatpush1.bf16.msra.mxu0 0
    %489 = vmatprep.subr.bf16.mxu0 0
    %490 = vmatpush1.bf16.msra.mxu0 0
    %491 = vmatprep.subr.bf16.mxu0 0
    %492 = vmatpush1.bf16.msra.mxu0 0
    %493 = vmatprep.subr.bf16.mxu0 0
    %494 = vmatpush1.bf16.msra.mxu0 0
    %495 = vmatprep.subr.bf16.mxu0 0
    %496 = vmatpush1.bf16.msra.mxu0 0
    %497 = vmatprep.subr.bf16.mxu0 0
    %498 = vmatpush1.bf16.msra.mxu0 0
    %499 = vmatprep.mubr.bf16.mxu0 0
    %500 = vmatmul.mubr.bf16.gmra.mrb[0].mxu0 %v459
    %v501 = vpop.f32.mrb[0].mxu0
    %v502 = vadd.f32 %v406, %v501
    %v503 = vpop.f32.mrb[0].mxu0
    %v504 = vpop.f32.mrb[0].mxu0
    %v505 = vadd.f32 %v411, %v504
    %v506 = vpop.f32.mrb[0].mxu0
    %507 = vmatprep.mubr.bf16.mxu0 0
    %508 = vmatmul.mubr.bf16.gmra.mrb[0].mxu0 %v460
    %v509 = vpop.f32.mrb[0].mxu0
    %v510 = vadd.f32 %v416, %v509
    %v511 = vpop.f32.mrb[0].mxu0
    %v512 = vpop.f32.mrb[0].mxu0
    %v513 = vadd.f32 %v421, %v512
    %v514 = vpop.f32.mrb[0].mxu0
    %515 = vmatprep.mubr.bf16.mxu0 0
    %516 = vmatmul.mubr.bf16.gmra.mrb[0].mxu0 %v461
    %v517 = vpop.f32.mrb[0].mxu0
    %v518 = vadd.f32 %v426, %v517
    %v519 = vpop.f32.mrb[0].mxu0
    %v520 = vpop.f32.mrb[0].mxu0
    %v521 = vadd.f32 %v431, %v520
    %v522 = vpop.f32.mrb[0].mxu0
    %523 = vmatprep.mubr.bf16.mxu0 0
    %524 = vmatmul.mubr.bf16.gmra.mrb[0].mxu0 %v462
    %v525 = vpop.f32.mrb[0].mxu0
    %v526 = vadd.f32 %v436, %v525
    %v527 = vpop.f32.mrb[0].mxu0
    %v528 = vpop.f32.mrb[0].mxu0
    %v529 = vadd.f32 %v441, %v528
    %v530 = vpop.f32.mrb[0].mxu0
    %531 = vdwg.mxu0
    %v532 = vtanh.pop %v502
    %v533 = vtanh.pop %v505
    %v534 = vtanh.pop %v510
    %v535 = vtanh.pop %v513
    %v536 = vtanh.pop %v518
    %v537 = vtanh.pop %v521
    %v538 = vtanh.pop %v526
    %v539 = vtanh.pop %v529
    %v540 = vld [vmem:[%s5] sm:$0xf]
    %v541 = vld [vmem:[%s5 + $0x4] sm:$0xf]
    %v542 = vld [vmem:[%s5 + $0x8] sm:$0xf]
    %v543 = vld [vmem:[%s5 + $0xc] sm:$0xf]
    %v544 = vpack.c.bf16 %v533, %v532
    %v545 = vpack.c.bf16 %v535, %v534
    %v546 = vpack.c.bf16 %v537, %v536
    %v547 = vpack.c.bf16 %v539, %v538
    %v548 = vld [vmem:[%s6] sm:$0xff]
    %v549 = vld [vmem:[%s6 + $0x8] sm:$0xff]
    %v550 = vld [vmem:[%s6 + $0x10] sm:$0xff]
    %v551 = vld [vmem:[%s6 + $0x18] sm:$0xff]
    %553 = vset.pattern.permute.xlu0 0
    %554 = vperm.xlu0 %553, %v548
    %v555 = vpop.permute.xlu0 %554
    %558 = vset.pattern.permute.xlu0 0
    %559 = vperm.xlu0 %558, %v549
    %v560 = vpop.permute.xlu0 %559
    %563 = vset.pattern.permute.xlu0 0
    %564 = vperm.xlu0 %563, %v550
    %v565 = vpop.permute.xlu0 %564
    %568 = vset.pattern.permute.xlu0 0
    %569 = vperm.xlu0 %568, %v551
    %v570 = vpop.permute.xlu0 %569
    %v576 = vunpack.c.l.b16 %v540
    %v577 = vunpack.c.l.b16 %v541
    %v578 = vunpack.c.l.b16 %v542
    %v579 = vunpack.c.l.b16 %v543
    %v580 = vpack.c.b16 %v577, %v576
    %v581 = vpack.c.b16 %v579, %v578
    %vm582 = vcmask 523264
    %v584 = vsel %vm582, %v580, 0
    %v587 = vsel %vm582, %v581, 0
    %589 = vmatprep.subr.bf16.mxu0 0
    %590 = vmatpush1.bf16.msra.mxu0 %v544
    %591 = vmatprep.subr.bf16.mxu0 0
    %592 = vmatpush1.bf16.msra.mxu0 %v545
    %593 = vmatprep.subr.bf16.mxu0 0
    %594 = vmatpush1.bf16.msra.mxu0 %v546
    %595 = vmatprep.subr.bf16.mxu0 0
    %596 = vmatpush1.bf16.msra.mxu0 %v547
    %597 = vmatprep.subr.bf16.mxu0 0
    %598 = vmatpush1.bf16.msra.mxu0 0
    %599 = vmatprep.subr.bf16.mxu0 0
    %600 = vmatpush1.bf16.msra.mxu0 0
    %601 = vmatprep.subr.bf16.mxu0 0
    %602 = vmatpush1.bf16.msra.mxu0 0
    %603 = vmatprep.subr.bf16.mxu0 0
    %604 = vmatpush1.bf16.msra.mxu0 0
    %605 = vmatprep.subr.bf16.mxu0 0
    %606 = vmatpush1.bf16.msra.mxu0 0
    %607 = vmatprep.subr.bf16.mxu0 0
    %608 = vmatpush1.bf16.msra.mxu0 0
    %609 = vmatprep.subr.bf16.mxu0 0
    %610 = vmatpush1.bf16.msra.mxu0 0
    %611 = vmatprep.subr.bf16.mxu0 0
    %612 = vmatpush1.bf16.msra.mxu0 0
    %613 = vmatprep.subr.bf16.mxu0 0
    %614 = vmatpush1.bf16.msra.mxu0 0
    %615 = vmatprep.subr.bf16.mxu0 0
    %616 = vmatpush1.bf16.msra.mxu0 0
    %617 = vmatprep.subr.bf16.mxu0 0
    %618 = vmatpush1.bf16.msra.mxu0 0
    %619 = vmatprep.subr.bf16.mxu0 0
    %620 = vmatpush1.bf16.msra.mxu0 0
    %621 = vmatprep.mubr.bf16.mxu0 0
    %622 = vmatmul.mubr.bf16.gmra.mrb[0].mxu0 %v584
    %v623 = vpop.f32.mrb[0].mxu0
    %v624 = vadd.f32 %v555, %v623
    %v625 = vpop.f32.mrb[0].mxu0
    %v626 = vpop.f32.mrb[0].mxu0
    %v627 = vadd.f32 %v560, %v626
    %v628 = vpop.f32.mrb[0].mxu0
    %629 = vmatprep.mubr.bf16.mxu0 0
    %630 = vmatmul.mubr.bf16.gmra.mrb[0].mxu0 %v587
    %v631 = vpop.f32.mrb[0].mxu0
    %v632 = vadd.f32 %v565, %v631
    %v633 = vpop.f32.mrb[0].mxu0
    %v634 = vpop.f32.mrb[0].mxu0
    %v635 = vadd.f32 %v570, %v634
    %v636 = vpop.f32.mrb[0].mxu0
    %637 = vdwg.mxu0
    %v638 = vtanh.pop %v624
    %v639 = vtanh.pop %v627
    %v640 = vtanh.pop %v632
    %v641 = vtanh.pop %v635
    %v642 = vld [vmem:[%s7] sm:$0x3]
    %v643 = vpack.c.bf16 %v639, %v638
    %v644 = vpack.c.bf16 %v641, %v640
    %v645 = vld [vmem:[%s8] sm:$0xf]
    %647 = vset.pattern.permute.xlu0 0
    %648 = vperm.xlu0 %647, %v645
    %v649 = vpop.permute.xlu0 %648
    %vm651 = vcmask 261120
    %v653 = vsel %vm651, %v642, 0
    %655 = vmatprep.subr.bf16.mxu0 0
    %656 = vmatpush1.bf16.msra.mxu0 %v643
    %657 = vmatprep.subr.bf16.mxu0 0
    %658 = vmatpush1.bf16.msra.mxu0 %v644
    %659 = vmatprep.subr.bf16.mxu0 0
    %660 = vmatpush1.bf16.msra.mxu0 0
    %661 = vmatprep.subr.bf16.mxu0 0
    %662 = vmatpush1.bf16.msra.mxu0 0
    %663 = vmatprep.subr.bf16.mxu0 0
    %664 = vmatpush1.bf16.msra.mxu0 0
    %665 = vmatprep.subr.bf16.mxu0 0
    %666 = vmatpush1.bf16.msra.mxu0 0
    %667 = vmatprep.subr.bf16.mxu0 0
    %668 = vmatpush1.bf16.msra.mxu0 0
    %669 = vmatprep.subr.bf16.mxu0 0
    %670 = vmatpush1.bf16.msra.mxu0 0
    %671 = vmatprep.subr.bf16.mxu0 0
    %672 = vmatpush1.bf16.msra.mxu0 0
    %673 = vmatprep.subr.bf16.mxu0 0
    %674 = vmatpush1.bf16.msra.mxu0 0
    %675 = vmatprep.subr.bf16.mxu0 0
    %676 = vmatpush1.bf16.msra.mxu0 0
    %677 = vmatprep.subr.bf16.mxu0 0
    %678 = vmatpush1.bf16.msra.mxu0 0
    %679 = vmatprep.subr.bf16.mxu0 0
    %680 = vmatpush1.bf16.msra.mxu0 0
    %681 = vmatprep.subr.bf16.mxu0 0
    %682 = vmatpush1.bf16.msra.mxu0 0
    %683 = vmatprep.subr.bf16.mxu0 0
    %684 = vmatpush1.bf16.msra.mxu0 0
    %685 = vmatprep.subr.bf16.mxu0 0
    %686 = vmatpush1.bf16.msra.mxu0 0
    %687 = vmatprep.mubr.bf16.mxu0 0
    %688 = vmatmul.mubr.bf16.gmra.mrb[0].mxu0 %v653
    %v689 = vpop.f32.mrb[0].mxu0
    %v690 = vadd.f32 %v649, %v689
    %v691 = vpop.f32.mrb[0].mxu0
    %v692 = vpop.f32.mrb[0].mxu0
    %v693 = vpop.f32.mrb[0].mxu0
    %694 = vdwg.mxu0
    %695 = vst [vmem:[#allocation2] sm:$0xf] %v690
    // Predicated region
    $region38: #{tpu_custom_call.1} parent=1 // pred_check
      _
    $region39: #{tpu_custom_call.1} parent=1 // pred_check_branch
      %697 = sbr.rel (0) target = $region41
    $region40: #{tpu_custom_call.1} parent=1 // pred_region
      %s699 = ssub.s32 64, 64
      %700 = vsyncadd [#allocation3], %s699
      %s702 = sshll.u32 [#allocation2], 4
      %s703 = int_to_ptr.vmem [resolvable:$true] %s702
      %705 = dma.vmem_to_hbm [thread:$0]  %s703, 64, %s9, [#allocation3]
    $region41: #{tpu_custom_call.1} parent=1 // pred_fallthru
      _
    // Predicated region
    $region42: #{tpu_custom_call.1} parent=1 // pred_check
      _
    $region43: #{tpu_custom_call.1} parent=1 // pred_check_branch
      %707 = sbr.rel (0) target = $region45
    $region44: #{tpu_custom_call.1} parent=1 // pred_region
      %708 = dma.done [#allocation3], 64
    $region45: #{tpu_custom_call.1} parent=1 // pred_fallthru
      _
    %709 = vsyncpa [#allocation3], 1

</llo_original>
